<compile_context>
chip_gen: v7x
topology: tpu7x:2x2x1
jax: 0.10.0
libtpu: 0.0.40
codegen_flags: <defaults>
</compile_context>

<pallas_src>
import numpy as np
import jax
import jax.numpy as jnp
from jax.experimental import pallas as pl
from jax.experimental.pallas import tpu as pltpu


def _round_up(x, m):
    return (x + m - 1) // m * m


def _stft_kernel(fr_ref, basis_ref, out_ref):
    # fr_ref:    (TF, n_fft)       bf16  — frame tile (windowing folded into RHS)
    # basis_ref: (n_fft, 2*NFP)    bf16  — [win*cos | -win*sin], freq padded to 128
    # out_ref:   (TF, 2*NFP)       f32   — [Re | Im] slab, lane-dense store
    out_ref[...] = jnp.dot(fr_ref[...], basis_ref[...],
                           preferred_element_type=jnp.float32)


def torch_stft_pallas(x, n_fft, hop_length, *, tile_frames=256,
                      compute_dtype=jnp.bfloat16):
    """Equivalent of TorchSTFT(n_fft, hop_length)(x) for x of shape (B, T)."""
    B, T = x.shape
    pad = n_fft // 2
    n_frames = 1 + T // hop_length          # center=True framing
    n_freq = n_fft // 2 + 1                 # onesided

    # --- glue (plain JAX): reflect pad, framing, window-folded DFT basis ---
    xp = jnp.pad(x, ((0, 0), (pad, pad)), mode="reflect")

    # Pre-frame with a gather so kernel tiles are contiguous and lane-aligned
    # (no unaligned hop-strided slices inside the kernel).
    idx = (jnp.arange(n_frames)[:, None] * hop_length
           + jnp.arange(n_fft)[None, :])
    frames = jnp.take(xp, idx, axis=1)                       # (B, n_frames, n_fft)

    # Periodic Hann (torch.hann_window default), folded into the bases.
    n = jnp.arange(n_fft, dtype=jnp.float32)
    window = 0.5 - 0.5 * jnp.cos(2.0 * jnp.pi * n / n_fft)   # (n_fft,)
    k = jnp.arange(n_freq, dtype=jnp.float32)
    ang = 2.0 * jnp.pi * n[:, None] * k[None, :] / n_fft     # (n_fft, n_freq)
    wcos = window[:, None] * jnp.cos(ang)                    # real basis
    wnsin = -(window[:, None] * jnp.sin(ang))                # imag basis (minus folded)

    # Concatenate into one lane-dense RHS: (n_fft, 2*NFP), NFP = n_freq -> x128.
    nfp = _round_up(n_freq, 128)
    basis = jnp.zeros((n_fft, 2 * nfp), jnp.float32)
    basis = basis.at[:, :n_freq].set(wcos)
    basis = basis.at[:, nfp:nfp + n_freq].set(wnsin)

    # Frame tile: fill MXU rows (256 on v6e/v7x), padded to a sublane multiple.
    tf = min(tile_frames, _round_up(n_frames, 8))
    n_frames_pad = _round_up(n_frames, tf)
    frames = jnp.pad(frames, ((0, 0), (0, n_frames_pad - n_frames), (0, 0)))

    # bf16 MXU inputs, f32 accumulation.
    frames2d = frames.reshape(B * n_frames_pad, n_fft).astype(compute_dtype)
    basis = basis.astype(compute_dtype)

    n_tiles = (B * n_frames_pad) // tf
    out_bytes = B * n_frames_pad * 2 * nfp * 4
    cost = pl.CostEstimate(
        flops=2 * B * n_frames_pad * n_fft * 2 * nfp,
        transcendentals=0,
        bytes_accessed=(frames2d.size * frames2d.dtype.itemsize
                        + basis.size * basis.dtype.itemsize + out_bytes),
    )

    out = pl.pallas_call(
        _stft_kernel,
        out_shape=jax.ShapeDtypeStruct((B * n_frames_pad, 2 * nfp), jnp.float32),
        grid=(n_tiles,),
        in_specs=[
            pl.BlockSpec((tf, n_fft), lambda i: (i, 0)),
            pl.BlockSpec((n_fft, 2 * nfp), lambda i: (0, 0)),
        ],
        out_specs=pl.BlockSpec((tf, 2 * nfp), lambda i: (i, 0)),
        compiler_params=pltpu.CompilerParams(
            dimension_semantics=("parallel",)),
        cost_estimate=cost,
    )(frames2d, basis)

    out = out.reshape(B, n_frames_pad, 2 * nfp)
    re = out[:, :n_frames, :n_freq]
    im = out[:, :n_frames, nfp:nfp + n_freq]
    # TODO(synk): Pallas kernels cannot emit complex dtypes; combine in wrapper.
    stft = (re + 1j * im).astype(jnp.complex64)              # (B, n_frames, n_freq)
    return jnp.transpose(stft, (0, 2, 1))                    # (B, n_freq, n_frames)


if __name__ == "__main__":
    n_fft, hop_length = 16, 4
    B, T = 2, 32

    key = jax.random.PRNGKey(0)
    x = jax.random.normal(key, (B, T), dtype=jnp.float32)

    out = jax.block_until_ready(torch_stft_pallas(x, n_fft, hop_length))

    # Independent reference via rFFT over identically framed/windowed signal.
    pad = n_fft // 2
    xp = jnp.pad(x, ((0, 0), (pad, pad)), mode="reflect")
    n_frames = 1 + T // hop_length
    idx = jnp.arange(n_frames)[:, None] * hop_length + jnp.arange(n_fft)[None, :]
    frames = xp[:, idx]                                       # (B, n_frames, n_fft)
    nn_ = jnp.arange(n_fft, dtype=jnp.float32)
    window = 0.5 - 0.5 * jnp.cos(2.0 * jnp.pi * nn_ / n_fft)
    ref = jnp.transpose(jnp.fft.rfft(frames * window, axis=-1), (0, 2, 1))

    assert out.shape == (B, n_fft // 2 + 1, n_frames), out.shape
    assert out.dtype == jnp.complex64, out.dtype
    np.testing.assert_allclose(np.asarray(out), np.asarray(ref),
                               rtol=2e-2, atol=2e-2)
    print("KERNEL_OK")
</pallas_src>

<mosaic_0001>
module attributes {stable_mosaic.version = 11 : i64} {
  func.func @_stft_kernel(%arg0: i32, %arg1: memref<16x16xbf16, #tpu.memory_space<vmem>>, %arg2: memref<16x256xbf16, #tpu.memory_space<vmem>>, %arg3: memref<16x256xf32, #tpu.memory_space<vmem>>) attributes {dimension_semantics = [#tpu.dimension_semantics<parallel>], iteration_bounds = array<i64: 2>, scalar_prefetch = 0 : i64, scratch_operands = 0 : i64, tpu.core_type = #tpu.core_type<tc>, window_params = [{transform_indices = @transform_0, window_bounds = array<i64: 16, 16>}, {pipeline_mode = #tpu.pipeline_mode<synchronous>, transform_indices = @transform_1, window_bounds = array<i64: 16, 256>}, {transform_indices = @transform_2, window_bounds = array<i64: 16, 256>}]} {
    %c0 = arith.constant 0 : index
    %c0_0 = arith.constant 0 : index
    %0 = vector.load %arg1[%c0, %c0_0] : memref<16x16xbf16, #tpu.memory_space<vmem>>, vector<16x16xbf16>
    %c0_1 = arith.constant 0 : index
    %c0_2 = arith.constant 0 : index
    %1 = vector.load %arg2[%c0_1, %c0_2] : memref<16x256xbf16, #tpu.memory_space<vmem>>, vector<16x256xbf16>
    %cst = arith.constant dense<0.000000e+00> : vector<16x256xf32>
    %2 = tpu.matmul %0, %1, %cst {dimension_numbers = #tpu.dot_dimension_numbers<[1], [0], [0], [1], [0, 0, 1, 1], [], []>} : vector<16x16xbf16>, vector<16x256xbf16>, vector<16x256xf32> -> vector<16x256xf32>
    %c0_3 = arith.constant 0 : index
    %c0_4 = arith.constant 0 : index
    %3 = vector.load %arg3[%c0_3, %c0_4] : memref<16x256xf32, #tpu.memory_space<vmem>>, vector<16x256xf32>
    tpu.vector_store %arg3[%c0_3, %c0_4], %2 {strides = array<i32>} : memref<16x256xf32, #tpu.memory_space<vmem>>, vector<16x256xf32>,
    return
  }
  func.func @transform_0(%arg0: i32) -> (i32, i32) {
    %c0_i32 = arith.constant 0 : i32
    %c0_i32_0 = arith.constant 0 : i32
    return %arg0, %c0_i32 : i32, i32
  }
  func.func @transform_1(%arg0: i32) -> (i32, i32) {
    %c0_i32 = arith.constant 0 : i32
    %c0_i32_0 = arith.constant 0 : i32
    %c0_i32_1 = arith.constant 0 : i32
    return %c0_i32, %c0_i32_0 : i32, i32
  }
  func.func @transform_2(%arg0: i32) -> (i32, i32) {
    %c0_i32 = arith.constant 0 : i32
    %c0_i32_0 = arith.constant 0 : i32
    return %arg0, %c0_i32 : i32, i32
  }
}

</mosaic_0001>

<llo_original>
// kernel: tpu_custom_call.1
$region0: #{tpu_custom_call.1}
  #allocation0 [shape = 'u32[]', space=smem, size = 0x4, offset = 0x4, fixed_abs, tag = 'smem constant byte address 0x4 - core index']
  #allocation1 [shape = 'u32[144,128]{1,0:T(1,128)}', space=vmem, size = 0x12000, scoped, tag = 'internal scratch']
  %s0 = inlined_call_operand.vmem [shape: bf16[32,16], index: 0, kind: input, shape index: {}]
  %s1 = inlined_call_operand.vmem [shape: bf16[16,256], index: 1, kind: input, shape index: {}]
  %s2 = inlined_call_operand.hbm [shape: f32[32,256], index: 2, kind: output, shape index: {}]
  %s3 = sld [smem:[#allocation0]]
  $region41: #{tpu_custom_call.1} parent=0
    _
  %s5 = ssub.s32 1, %s3
  %s6 = scalar_select 0, %s5, %s3
  $region1: #{tpu_custom_call.1} parent=0
    #allocation2 [shape = 'u8[32768]{0}', space=vmem, size = 0x8000, scoped, tag = 'output window, operand 0']
    #allocation3 [shape = 's32[2]{0}', space=sflag, size = 0x8, scoped, tag = 'scoped memory for tpu_custom_call.1']
    %7 = vsyncpa [#allocation3], 0
    %s8 = scalar_lea.sflag [#allocation3], 1
    %9 = vsyncpa %s8, 0
    loop: start=0, step=1, limit=4
    $region2: #{tpu_custom_call.1} parent=1 // loop_pre_header
      _
    $region3: #{tpu_custom_call.1} parent=1 // loop_header
      %s11 = sphi 0, %s15
      %p12 = scmp.ge.s32.totalorder %s11, 4
      %s21 = sphi 0, %s23
      %s24 = sphi 0, %s21
      %s25 = sphi 0, %s24
      %s41 = sphi 0, %s25
      %s45 = sphi 0, %s45
      %s47 = sphi 0, %s45
      %s48 = sphi 0, %s47
      %s62 = sphi 0, %s48
      %s68 = sphi 0, %s70
      %s71 = sphi 0, %s68
      %s72 = sphi 0, %s71
      %s88 = sphi 0, %s72
    $region4: #{tpu_custom_call.1} parent=1 // loop_header_branch
      %14 = sbr.rel (%p12) target = $region8
    $region5: #{tpu_custom_call.1} parent=1 // loop_body
      %s16 = ssub.s32 %s11, 1
      %s17 = ssub.s32 %s11, 2
      %s18 = sadd.s32 %s11, 1
      %s19 = ssub.s32 %s11, %s18
      %p20 = scmp.eq.s32.totalorder %s19, 0
      %s22 = sadd.s32 %s21, 1
      %s23 = scalar_select %p20, %s21, %s22
      %p26 = pneg %p20
      %p27 = scmp.eq.s32.totalorder %s11, 1
      %p28 = por %p26, %p27
      %p29 = scmp.ne.s32.totalorder %s21, %s24
      %p30 = scmp.eq.s32.totalorder %s11, 0
      %p31 = por %p29, %p30
      %p32 = scmp.ne.s32.totalorder %s21, %s24
      %p33 = scmp.eq.s32.totalorder %s16, 1
      %p34 = por %p32, %p33
      %p35 = scmp.ne.s32.totalorder %s24, %s25
      %p36 = scmp.eq.s32.totalorder %s16, 0
      %p37 = por %p35, %p36
      %p38 = scmp.ne.s32.totalorder %s24, %s25
      %p39 = scmp.eq.s32.totalorder %s17, 1
      %p40 = por %p38, %p39
      %p42 = scmp.ne.s32.totalorder %s25, %s41
      %p43 = scmp.eq.s32.totalorder %s17, 0
      %p44 = por %p42, %p43
      %s46 = sadd.s32 %s45, 1
      %p49 = scmp.eq.s32.totalorder %s11, 1
      %p50 = scmp.ne.s32.totalorder %s45, %s47
      %p51 = scmp.eq.s32.totalorder %s11, 0
      %p52 = por %p50, %p51
      %p53 = scmp.ne.s32.totalorder %s45, %s47
      %p54 = scmp.eq.s32.totalorder %s16, 1
      %p55 = por %p53, %p54
      %p56 = scmp.ne.s32.totalorder %s47, %s48
      %p57 = scmp.eq.s32.totalorder %s16, 0
      %p58 = por %p56, %p57
      %p59 = scmp.ne.s32.totalorder %s47, %s48
      %p60 = scmp.eq.s32.totalorder %s17, 1
      %p61 = por %p59, %p60
      %p63 = scmp.ne.s32.totalorder %s48, %s62
      %p64 = scmp.eq.s32.totalorder %s17, 0
      %p65 = por %p63, %p64
      %s66 = ssub.s32 %s11, %s18
      %p67 = scmp.eq.s32.totalorder %s66, 0
      %s69 = sadd.s32 %s68, 1
      %s70 = scalar_select %p67, %s68, %s69
      %p73 = pneg %p67
      %p74 = scmp.eq.s32.totalorder %s11, 1
      %p75 = por %p73, %p74
      %p76 = scmp.ne.s32.totalorder %s68, %s71
      %p77 = scmp.eq.s32.totalorder %s11, 0
      %p78 = por %p76, %p77
      %p79 = scmp.ne.s32.totalorder %s68, %s71
      %p80 = scmp.eq.s32.totalorder %s16, 1
      %p81 = por %p79, %p80
      %p82 = scmp.ne.s32.totalorder %s71, %s72
      %p83 = scmp.eq.s32.totalorder %s16, 0
      %p84 = por %p82, %p83
      %p85 = scmp.ne.s32.totalorder %s71, %s72
      %p86 = scmp.eq.s32.totalorder %s17, 1
      %p87 = por %p85, %p86
      %p89 = scmp.ne.s32.totalorder %s72, %s88
      %p90 = scmp.eq.s32.totalorder %s17, 0
      %p91 = por %p89, %p90
      %p92 = scmp.le.s32.totalorder 1, %s11
      %p93 = scmp.lt.s32.totalorder %s11, 3
      %p94 = pnand %p92, %p93
      %p95 = pneg %p94
      // Predicated region
      $region9: #{tpu_custom_call.1} parent=5 // pred_check
        _
      $region10: #{tpu_custom_call.1} parent=5 // pred_check_branch
        %97 = sbr.rel (%p94) target = $region12
      $region11: #{tpu_custom_call.1} parent=5 // pred_region
        %s98 = ssub.s32 %s11, 1
        // Predicated region
        $region13: #{tpu_custom_call.1} parent=11 // pred_check
          %p99 = pneg %p58
        $region14: #{tpu_custom_call.1} parent=11 // pred_check_branch
          %101 = sbr.rel (%p99) target = $region16
        $region15: #{tpu_custom_call.1} parent=11 // pred_region
          _
        $region16: #{tpu_custom_call.1} parent=11 // pred_fallthru
          _
      $region12: #{tpu_custom_call.1} parent=5 // pred_fallthru
        _
      %p102 = scmp.lt.s32.totalorder %s11, 2
      // Predicated region
      $region17: #{tpu_custom_call.1} parent=5 // pred_check
        %p103 = pneg %p102
      $region18: #{tpu_custom_call.1} parent=5 // pred_check_branch
        %105 = sbr.rel (%p103) target = $region20
      $region19: #{tpu_custom_call.1} parent=5 // pred_region
        // Predicated region
        $region21: #{tpu_custom_call.1} parent=19 // pred_check
          %p106 = pneg %p31
        $region22: #{tpu_custom_call.1} parent=19 // pred_check_branch
          %108 = sbr.rel (%p106) target = $region24
        $region23: #{tpu_custom_call.1} parent=19 // pred_region
          %s109 = smul.u32 2, %s11
          %p110 = scmp.lt.s32.totalorder %s109, 3
          %s111 = scalar_select %p110, %s109, 3
          %s112 = smul.addr %s111, 4
          %s113 = scalar_lea.vmem %s0, %s112
          %s114 = smul.u32 2, %s11
        $region24: #{tpu_custom_call.1} parent=19 // pred_fallthru
          _
      $region20: #{tpu_custom_call.1} parent=5 // pred_fallthru
        _
      %p115 = scmp.le.s32.totalorder 1, %s11
      %p116 = scmp.lt.s32.totalorder %s11, 3
      %p117 = pnand %p115, %p116
      %p118 = pneg %p117
      // Predicated region
      $region25: #{tpu_custom_call.1} parent=5 // pred_check
        _
      $region26: #{tpu_custom_call.1} parent=5 // pred_check_branch
        %120 = sbr.rel (%p117) target = $region28
      $region27: #{tpu_custom_call.1} parent=5 // pred_region
        %s121 = ssub.s32 %s11, 1
        %s122 = smul.u32 2, %s16
        %p123 = scmp.lt.s32.totalorder %s122, 3
        %s124 = scalar_select %p123, %s122, 3
        %s125 = smul.addr %s124, 4
        %s126 = scalar_lea.vmem %s0, %s125
        %p127 = pneg %p37
        %p128 = pneg %p34
        %p129 = pneg %p58
        %p130 = pneg %p55
        %p131 = pneg %p84
        %p132 = pneg %p81
        %s133 = sand.u32 %s71, 1
        %s134 = scalar_lea.sflag [#allocation3], %s133
        %s135 = sand.u32 %s71, 1
        %s136 = smul.addr %s135, 32
        %s137 = scalar_lea.vmem [#allocation2], %s136
        %s138 = smul.u32 2, %s16
        %p139 = scmp.lt.s32.totalorder %s138, 3
        %s140 = scalar_select %p139, %s138, 3
        %s141 = smul.addr %s140, 4
        %s142 = scalar_lea.vmem %s0, %s141
        %s143 = smul.u32 2, %s16
        %s144 = smul.u32 2, %s16
        %v146 = vld [vmem:[%s142] sm:$0xf]
        %v147 = vld [vmem:[%s142 + $0x4] sm:$0xf]
        %v148 = vld [vmem:[%s1] sm:$0xff]
        %v149 = vld [vmem:[%s1 + $0x8] sm:$0xff]
        %v152 = vunpack.c.l.b16 %v146
        %v153 = vunpack.c.l.b16 %v147
        %v154 = vpack.c.b16 %v153, %v152
        %v157 = vunpack.c.l.b16 %v148
        %v158 = vunpack.c.h.b16 %v148
        %v159 = vunpack.c.l.b16 %v149
        %v160 = vunpack.c.h.b16 %v149
        %v161 = vpack.c.b16 %v159, %v157
        %v162 = vpack.c.b16 %v160, %v158
        %vm165 = vcmask 130048
        %v167 = vsel %vm165, %v154, 0
        %169 = vmatprep.subr.bf16.mxu0 %v162
        %170 = vmatpush1.bf16.msra.mxu0 %v161
        %171 = vmatprep.subr.bf16.mxu0 0
        %172 = vmatpush1.bf16.msra.mxu0 0
        %173 = vmatprep.subr.bf16.mxu0 0
        %174 = vmatpush1.bf16.msra.mxu0 0
        %175 = vmatprep.subr.bf16.mxu0 0
        %176 = vmatpush1.bf16.msra.mxu0 0
        %177 = vmatprep.subr.bf16.mxu0 0
        %178 = vmatpush1.bf16.msra.mxu0 0
        %179 = vmatprep.subr.bf16.mxu0 0
        %180 = vmatpush1.bf16.msra.mxu0 0
        %181 = vmatprep.subr.bf16.mxu0 0
        %182 = vmatpush1.bf16.msra.mxu0 0
        %183 = vmatprep.subr.bf16.mxu0 0
        %184 = vmatpush1.bf16.msra.mxu0 0
        %185 = vmatprep.subr.bf16.mxu0 0
        %186 = vmatpush1.bf16.msra.mxu0 0
        %187 = vmatprep.subr.bf16.mxu0 0
        %188 = vmatpush1.bf16.msra.mxu0 0
        %189 = vmatprep.subr.bf16.mxu0 0
        %190 = vmatpush1.bf16.msra.mxu0 0
        %191 = vmatprep.subr.bf16.mxu0 0
        %192 = vmatpush1.bf16.msra.mxu0 0
        %193 = vmatprep.subr.bf16.mxu0 0
        %194 = vmatpush1.bf16.msra.mxu0 0
        %195 = vmatprep.subr.bf16.mxu0 0
        %196 = vmatpush1.bf16.msra.mxu0 0
        %197 = vmatprep.subr.bf16.mxu0 0
        %198 = vmatpush1.bf16.msra.mxu0 0
        %199 = vmatprep.subr.bf16.mxu0 0
        %200 = vmatpush1.bf16.msra.mxu0 0
        %201 = vmatprep.mubr.bf16.mxu0 0
        %202 = vmatmul.mubr.bf16.gmra.mrb[0].mxu0 %v167
        %v203 = vpop.f32.mrb[0].mxu0
        %v204 = vadd.f32 0.0, %v203
        %v205 = vpop.f32.mrb[0].mxu0
        %v206 = vadd.f32 0.0, %v205
        %v207 = vpop.f32.mrb[0].mxu0
        %v208 = vadd.f32 0.0, %v207
        %v209 = vpop.f32.mrb[0].mxu0
        %v210 = vadd.f32 0.0, %v209
        %211 = vdwg.mxu0
        %212 = vst [vmem:[%s137] sm:$0xff] %v204
        %213 = vst [vmem:[%s137 + $0x8] sm:$0xff] %v206
        %214 = vst [vmem:[%s137 + $0x10] sm:$0xff] %v208
        %215 = vst [vmem:[%s137 + $0x18] sm:$0xff] %v210
        %s216 = sand.u32 %s71, 1
        %s217 = scalar_lea.sflag [#allocation3], %s216
        %s218 = sand.u32 %s71, 1
        %s219 = smul.addr %s218, 32
        %s220 = scalar_lea.vmem [#allocation2], %s219
        // Predicated region
        $region29: #{tpu_custom_call.1} parent=27 // pred_check
          %p221 = pneg %p81
        $region30: #{tpu_custom_call.1} parent=27 // pred_check_branch
          %223 = sbr.rel (%p221) target = $region32
        $region31: #{tpu_custom_call.1} parent=27 // pred_region
          %s224 = smul.u32 2, %s16
          %s226 = ssub.s32 512, 512
          %227 = vsyncadd %s217, %s226
          %s228 = smul.addr %s224, 2
          %s229 = smul.addr %s228, 128
          %s230 = scalar_lea.hbm %s2, %s229
          %s231 = sshll.u32 %s220, 4
          %s232 = int_to_ptr.vmem [resolvable:$true] %s231
          %237 = dma.vmem_to_hbm [thread:$0]  %s232, 512, %s230, %s217, 256, 256, 16
        $region32: #{tpu_custom_call.1} parent=27 // pred_fallthru
          _
      $region28: #{tpu_custom_call.1} parent=5 // pred_fallthru
        _
      %p238 = scmp.le.s32.totalorder 2, %s11
      // Predicated region
      $region33: #{tpu_custom_call.1} parent=5 // pred_check
        %p239 = pneg %p238
      $region34: #{tpu_custom_call.1} parent=5 // pred_check_branch
        %241 = sbr.rel (%p239) target = $region36
      $region35: #{tpu_custom_call.1} parent=5 // pred_region
        %s242 = ssub.s32 %s11, 2
        // Predicated region
        $region37: #{tpu_custom_call.1} parent=35 // pred_check
          %p243 = pneg %p87
        $region38: #{tpu_custom_call.1} parent=35 // pred_check_branch
          %245 = sbr.rel (%p243) target = $region40
        $region39: #{tpu_custom_call.1} parent=35 // pred_region
          %s246 = sand.u32 %s72, 1
          %s247 = scalar_lea.sflag [#allocation3], %s246
          %s248 = sand.u32 %s72, 1
          %s249 = smul.addr %s248, 32
          %s250 = scalar_lea.vmem [#allocation2], %s249
          %251 = dma.done %s247, 512
        $region40: #{tpu_custom_call.1} parent=35 // pred_fallthru
          _
      $region36: #{tpu_custom_call.1} parent=5 // pred_fallthru
        _
    $region6: #{tpu_custom_call.1} parent=1 // loop_footer
      %s15 = sadd.s32 1, %s11
    $region7: #{tpu_custom_call.1} parent=1 // loop_footer_branch
      %10 = sbr.rel target = $region3
    $region8: #{tpu_custom_call.1} parent=1 // loop_exit
      _
    %252 = vsyncpa [#allocation3], 1
    %s253 = scalar_lea.sflag [#allocation3], 1
    %254 = vsyncpa %s253, 1

</llo_original>
